<compile_context>
chip_gen: v7x
topology: tpu7x:2x2x1
jax: 0.10.0
libtpu: 0.0.40
codegen_flags: <defaults>
</compile_context>

<pallas_src>
import functools

import jax
import jax.numpy as jnp
from jax.experimental import pallas as pl
from jax.experimental.pallas import tpu as pltpu


# ---------------------------------------------------------------------------
# Penalization derivatives (reference / host side)
# ---------------------------------------------------------------------------
def _phi_cvx(u, delta):
    # phi_s1: derivative of a smooth convex (pseudo-Huber) penalty
    return u * jax.lax.rsqrt(u * u + delta * delta)


def _phi_ncvx(u, delta):
    # phi_s2: derivative of a smooth non-convex (Cauchy) penalty
    return u / (u * u + delta * delta)


# ---------------------------------------------------------------------------
# Shared per-iteration body (runs inside the kernels)
# ---------------------------------------------------------------------------
def _iter_body(x_f32, htxd_f32, w12, w3m, d_cvx, d_ncvx, *, approx_recip):
    n = htxd_f32.shape[-1]
    # One fused MXU pass for V1(x) and V2(x): 256-wide output fills the
    # 256-lane MXU on v6e/v7x instead of two half-width passes.
    xm = x_f32.astype(w12.dtype)
    v12 = jnp.dot(xm, w12, preferred_element_type=jnp.float32)
    v1x = v12[:, :n]
    v2x = v12[:, n:]

    first_branch = v1x - htxd_f32                                   # V1(x) - Ht_x_deg
    second_branch = v2x * jax.lax.rsqrt(v2x * v2x + d_cvx * d_cvx)  # phi_s1 (EUP rsqrt)
    # phi_s2 via EUP reciprocal (approx when bf16 path) instead of VALU divide.
    second_branch1 = v2x * pl.reciprocal(v2x * v2x + d_ncvx * d_ncvx,
                                         approx=approx_recip)

    # Single K=3N contraction against the Mat-folded V3 weight (one MXU
    # push/drain instead of 3 dots + 2 VPU adds + a second matmul for Mat).
    concat = jnp.concatenate([first_branch, second_branch, second_branch1],
                             axis=-1).astype(w3m.dtype)
    glob = jnp.dot(concat, w3m, preferred_element_type=jnp.float32)

    return x_f32 - glob


# ---------------------------------------------------------------------------
# Kernels
# ---------------------------------------------------------------------------
def _iter_mm_kernel(delta_ref,            # SMEM (2,): [delta_cvx, delta_ncvx]
                    x_ref, htxd_ref,      # VMEM (TB, N)
                    w12_ref,              # VMEM (N, 2N)
                    w3m_ref,              # VMEM (3N, N)
                    out_ref,              # VMEM (TB, N)
                    *, approx_recip):
    x = x_ref[...].astype(jnp.float32)
    htxd = htxd_ref[...].astype(jnp.float32)
    new_x = _iter_body(x, htxd, w12_ref[...], w3m_ref[...],
                       delta_ref[0], delta_ref[1], approx_recip=approx_recip)
    out_ref[...] = new_x.astype(out_ref.dtype)


def _iter_mm_chain_kernel(delta_ref,          # SMEM (2,)
                          x_ref, htxd_ref,    # VMEM (TB, N)
                          w12_ref,            # VMEM (1, N, 2N)  layer slice
                          w3m_ref,            # VMEM (1, 3N, N)  layer slice
                          out_ref,            # VMEM (TB, N)  -- carry, resident
                          *, approx_recip):
    # Layer axis is the innermost ("arbitrary") grid axis; the output block is
    # the carry x_k and stays resident in VMEM across layers.
    @pl.when(pl.program_id(1) == 0)
    def _():
        out_ref[...] = x_ref[...]

    x = out_ref[...].astype(jnp.float32)
    htxd = htxd_ref[...].astype(jnp.float32)
    new_x = _iter_body(x, htxd, w12_ref[0], w3m_ref[0],
                       delta_ref[0], delta_ref[1], approx_recip=approx_recip)
    out_ref[...] = new_x.astype(out_ref.dtype)


# ---------------------------------------------------------------------------
# Weight preparation (call ONCE, outside the per-iteration path)
# ---------------------------------------------------------------------------
def prepare_iter_weights(V1, V2, V3, Mat, mxu_dtype=jnp.bfloat16):
    """V1, V2, Mat: (N, N); V3: (N, 3N)  ->  w12 (N, 2N), w3m (3N, N)."""
    hp = jax.lax.Precision.HIGHEST
    w12 = jnp.concatenate([V1.T, V2.T], axis=1)
    w3m = jnp.dot(V3.T, Mat.T, precision=hp)       # fold Mat into V3 offline
    return w12.astype(mxu_dtype), w3m.astype(mxu_dtype)


def prepare_chain_weights(layer_weights, mxu_dtype=jnp.bfloat16):
    """layer_weights: list of (V1, V2, V3, Mat) -> stacked (K,N,2N), (K,3N,N)."""
    w12s, w3ms = [], []
    for (V1, V2, V3, Mat) in layer_weights:
        w12, w3m = prepare_iter_weights(V1, V2, V3, Mat, mxu_dtype)
        w12s.append(w12)
        w3ms.append(w3m)
    return jnp.stack(w12s), jnp.stack(w3ms)


# ---------------------------------------------------------------------------
# Helpers
# ---------------------------------------------------------------------------
def _nbytes(a):
    return a.size * jnp.dtype(a.dtype).itemsize


def _compiler_params(dim_sem, resident_bytes):
    kwargs = dict(dimension_semantics=dim_sem)
    # v5e's default scoped-VMEM limit is 16 MiB; raise it explicitly when the
    # resident blocks exceed it.  Cap at 56 MiB so the request also fits
    # v7x's 64 MiB physical VMEM (for larger N, bf16 weights keep us under).
    if resident_bytes > (16 << 20):
        kwargs["vmem_limit_bytes"] = int(min(resident_bytes + (8 << 20), 56 << 20))
    return pltpu.CompilerParams(**kwargs)


def _pick_batch_tile(B):
    return B if B <= 256 else 256


# ---------------------------------------------------------------------------
# Wrappers
# ---------------------------------------------------------------------------
def iter_mm(x, ht_x_degraded, w12, w3m, delta_cvx, delta_ncvx,
            *, batch_tile=None, approx_reciprocal=True):
    """One 'MM'-mode iteration.  w12/w3m from prepare_iter_weights()."""
    B, N = x.shape
    assert w12.shape == (N, 2 * N) and w3m.shape == (3 * N, N)
    tb = batch_tile if batch_tile is not None else _pick_batch_tile(B)
    assert B % tb == 0, "B must be divisible by the batch tile"
    grid = (B // tb,)

    deltas = jnp.array([delta_cvx, delta_ncvx], dtype=jnp.float32)

    act_spec = pl.BlockSpec((tb, N), lambda b, d: (b, 0))
    w12_spec = pl.BlockSpec((N, 2 * N), lambda b, d: (0, 0))       # resident
    w3m_spec = pl.BlockSpec((3 * N, N), lambda b, d: (0, 0))       # resident

    resident_bytes = (2 * (_nbytes(w12) + _nbytes(w3m))
                      + 3 * 2 * tb * N * jnp.dtype(x.dtype).itemsize)

    grid_spec = pltpu.PrefetchScalarGridSpec(
        num_scalar_prefetch=1,
        grid=grid,
        in_specs=[act_spec, act_spec, w12_spec, w3m_spec],
        out_specs=act_spec,
    )
    kernel = functools.partial(_iter_mm_kernel, approx_recip=approx_reciprocal)
    return pl.pallas_call(
        kernel,
        out_shape=jax.ShapeDtypeStruct((B, N), x.dtype),
        grid_spec=grid_spec,
        compiler_params=_compiler_params(("parallel",), resident_bytes),
    )(deltas, x, ht_x_degraded, w12, w3m)


def iter_mm_chain(x, ht_x_degraded, w12_all, w3m_all, delta_cvx, delta_ncvx,
                  *, batch_tile=None, approx_reciprocal=True):
    """K unrolled 'MM' iterations fused into one pallas_call.

    w12_all: (K, N, 2N), w3m_all: (K, 3N, N) from prepare_chain_weights().
    The carry x_k lives in the resident output VMEM block; per-layer weights
    are streamed/pipelined by BlockSpec DMA instead of one HBM round trip per
    Python-level call.
    """
    B, N = x.shape
    K = w12_all.shape[0]
    assert w12_all.shape == (K, N, 2 * N) and w3m_all.shape == (K, 3 * N, N)
    tb = batch_tile if batch_tile is not None else _pick_batch_tile(B)
    assert B % tb == 0, "B must be divisible by the batch tile"
    grid = (B // tb, K)

    deltas = jnp.array([delta_cvx, delta_ncvx], dtype=jnp.float32)

    act_spec = pl.BlockSpec((tb, N), lambda b, l, d: (b, 0))
    w12_spec = pl.BlockSpec((1, N, 2 * N), lambda b, l, d: (l, 0, 0))
    w3m_spec = pl.BlockSpec((1, 3 * N, N), lambda b, l, d: (l, 0, 0))

    resident_bytes = (2 * ((_nbytes(w12_all) + _nbytes(w3m_all)) // K)
                      + 3 * 2 * tb * N * jnp.dtype(x.dtype).itemsize)

    grid_spec = pltpu.PrefetchScalarGridSpec(
        num_scalar_prefetch=1,
        grid=grid,
        in_specs=[act_spec, act_spec, w12_spec, w3m_spec],
        out_specs=act_spec,
    )
    kernel = functools.partial(_iter_mm_chain_kernel,
                               approx_recip=approx_reciprocal)
    return pl.pallas_call(
        kernel,
        out_shape=jax.ShapeDtypeStruct((B, N), x.dtype),
        grid_spec=grid_spec,
        compiler_params=_compiler_params(("parallel", "arbitrary"),
                                         resident_bytes),
    )(deltas, x, ht_x_degraded, w12_all, w3m_all)


# ---------------------------------------------------------------------------
# Pure-JAX references (mirror the PyTorch forward, mode == 'MM')
# ---------------------------------------------------------------------------
def iter_mm_ref(x, ht_x_degraded, V1, V2, V3, Mat, delta_cvx, delta_ncvx):
    hp = jax.lax.Precision.HIGHEST
    v1x = jnp.dot(x, V1.T, precision=hp)
    v2x = jnp.dot(x, V2.T, precision=hp)
    fb = v1x - ht_x_degraded
    sb = _phi_cvx(v2x, delta_cvx)
    sb1 = _phi_ncvx(v2x, delta_ncvx)
    concat = jnp.concatenate([fb, sb, sb1], axis=1)
    glob = jnp.dot(concat, V3.T, precision=hp)
    glob = jnp.dot(glob, Mat.T, precision=hp)
    return x - glob


def iter_mm_chain_ref(x, ht_x_degraded, layer_weights, delta_cvx, delta_ncvx):
    for (V1, V2, V3, Mat) in layer_weights:
        x = iter_mm_ref(x, ht_x_degraded, V1, V2, V3, Mat, delta_cvx, delta_ncvx)
    return x


# ---------------------------------------------------------------------------
# Demo / correctness check
# ---------------------------------------------------------------------------
if __name__ == "__main__":
    B, N = 8, 128            # batch, n_in == n_out (concat of size 3N feeds V3)
    K_layers = 4             # unrolled-HQ depth for the fused chain kernel
    dtype = jnp.float32

    key = jax.random.PRNGKey(0)
    keys = jax.random.split(key, 2 + 4 * K_layers)
    x = jax.random.normal(keys[0], (B, N), dtype)
    ht_x_degraded = jax.random.normal(keys[1], (B, N), dtype)

    # Deterministic "checkpoint-free" parameter init (scaled like nn.Linear).
    layer_weights = []
    for li in range(K_layers):
        kk = keys[2 + 4 * li: 2 + 4 * (li + 1)]
        V1 = jax.random.normal(kk[0], (N, N), dtype) / jnp.sqrt(N)
        V2 = jax.random.normal(kk[1], (N, N), dtype) / jnp.sqrt(N)
        V3 = jax.random.normal(kk[2], (N, 3 * N), dtype) / jnp.sqrt(3 * N)
        Mat = jax.random.normal(kk[3], (N, N), dtype) / jnp.sqrt(N)
        layer_weights.append((V1, V2, V3, Mat))

    delta_s_cvx = 0.5
    delta_s_ncvx = 1.5

    V1, V2, V3, Mat = layer_weights[0]
    ref = iter_mm_ref(x, ht_x_degraded, V1, V2, V3, Mat,
                      delta_s_cvx, delta_s_ncvx)

    # (1) f32 MXU path, exact reciprocal: tight agreement with the reference.
    w12_f32, w3m_f32 = prepare_iter_weights(V1, V2, V3, Mat,
                                            mxu_dtype=jnp.float32)
    out_f32 = jax.block_until_ready(
        iter_mm(x, ht_x_degraded, w12_f32, w3m_f32, delta_s_cvx, delta_s_ncvx,
                approx_reciprocal=False))
    assert out_f32.shape == (B, N)
    assert jnp.allclose(out_f32, ref, atol=1e-3, rtol=1e-3), \
        "f32 kernel mismatch vs JAX reference"

    # (2) bf16 MXU inputs (f32 accumulation) + approx EUP reciprocal.
    w12_bf, w3m_bf = prepare_iter_weights(V1, V2, V3, Mat,
                                          mxu_dtype=jnp.bfloat16)
    out_bf = jax.block_until_ready(
        iter_mm(x, ht_x_degraded, w12_bf, w3m_bf, delta_s_cvx, delta_s_ncvx))
    assert jnp.allclose(out_bf, ref, atol=5e-2, rtol=5e-2), \
        "bf16 kernel mismatch vs JAX reference"

    # (3) Fused K-iteration chain (one pallas_call, carry resident in VMEM).
    w12_all, w3m_all = prepare_chain_weights(layer_weights,
                                             mxu_dtype=jnp.float32)
    out_chain = jax.block_until_ready(
        iter_mm_chain(x, ht_x_degraded, w12_all, w3m_all,
                      delta_s_cvx, delta_s_ncvx, approx_reciprocal=False))
    ref_chain = iter_mm_chain_ref(x, ht_x_degraded, layer_weights,
                                  delta_s_cvx, delta_s_ncvx)
    assert out_chain.shape == (B, N)
    assert jnp.allclose(out_chain, ref_chain, atol=1e-3, rtol=1e-3), \
        "fused-chain kernel mismatch vs JAX reference"

    print("KERNEL_OK")
</pallas_src>

<mosaic_0001>
module attributes {stable_mosaic.version = 11 : i64} {
  func.func @_iter_mm_kernel(%arg0: i32, %arg1: memref<2xf32, #tpu.memory_space<smem>>, %arg2: memref<8x128xf32, #tpu.memory_space<vmem>>, %arg3: memref<8x128xf32, #tpu.memory_space<vmem>>, %arg4: memref<128x256xf32, #tpu.memory_space<vmem>>, %arg5: memref<384x128xf32, #tpu.memory_space<vmem>>, %arg6: memref<8x128xf32, #tpu.memory_space<vmem>>) attributes {dimension_semantics = [#tpu.dimension_semantics<parallel>], iteration_bounds = array<i64: 1>, scalar_prefetch = 1 : i64, scratch_operands = 0 : i64, tpu.core_type = #tpu.core_type<tc>, window_params = [{transform_indices = @transform_0, window_bounds = array<i64: 8, 128>}, {transform_indices = @transform_1, window_bounds = array<i64: 8, 128>}, {pipeline_mode = #tpu.pipeline_mode<synchronous>, transform_indices = @transform_2, window_bounds = array<i64: 128, 256>}, {pipeline_mode = #tpu.pipeline_mode<synchronous>, transform_indices = @transform_3, window_bounds = array<i64: 384, 128>}, {transform_indices = @transform_4, window_bounds = array<i64: 8, 128>}]} {
    %c0 = arith.constant 0 : index
    %c0_0 = arith.constant 0 : index
    %0 = vector.load %arg2[%c0, %c0_0] : memref<8x128xf32, #tpu.memory_space<vmem>>, vector<8x128xf32>
    %c0_1 = arith.constant 0 : index
    %c0_2 = arith.constant 0 : index
    %1 = vector.load %arg3[%c0_1, %c0_2] : memref<8x128xf32, #tpu.memory_space<vmem>>, vector<8x128xf32>
    %c0_3 = arith.constant 0 : index
    %c0_4 = arith.constant 0 : index
    %2 = vector.load %arg4[%c0_3, %c0_4] : memref<128x256xf32, #tpu.memory_space<vmem>>, vector<128x256xf32>
    %c0_5 = arith.constant 0 : index
    %c0_6 = arith.constant 0 : index
    %3 = vector.load %arg5[%c0_5, %c0_6] : memref<384x128xf32, #tpu.memory_space<vmem>>, vector<384x128xf32>
    %c0_7 = arith.constant 0 : index
    %4 = memref.load %arg1[%c0_7] : memref<2xf32, #tpu.memory_space<smem>>
    %c1 = arith.constant 1 : index
    %5 = memref.load %arg1[%c1] : memref<2xf32, #tpu.memory_space<smem>>
    %cst = arith.constant dense<0.000000e+00> : vector<8x256xf32>
    %6 = tpu.matmul %0, %2, %cst {dimension_numbers = #tpu.dot_dimension_numbers<[1], [0], [0], [1], [0, 0, 1, 1], [], []>} : vector<8x128xf32>, vector<128x256xf32>, vector<8x256xf32> -> vector<8x256xf32>
    %7 = vector.extract_strided_slice %6 {offsets = [0, 0], sizes = [8, 128], strides = [1, 1]} : vector<8x256xf32> to vector<8x128xf32>
    %8 = vector.extract_strided_slice %6 {offsets = [0, 128], sizes = [8, 128], strides = [1, 1]} : vector<8x256xf32> to vector<8x128xf32>
    %9 = arith.subf %7, %1 : vector<8x128xf32>
    %10 = arith.mulf %8, %8 : vector<8x128xf32>
    %11 = arith.mulf %4, %4 : f32
    %12 = vector.broadcast %11 : f32 to vector<8x128xf32>
    %13 = arith.addf %10, %12 : vector<8x128xf32>
    %14 = math.rsqrt %13 : vector<8x128xf32>
    %15 = arith.mulf %8, %14 : vector<8x128xf32>
    %16 = arith.mulf %8, %8 : vector<8x128xf32>
    %17 = arith.mulf %5, %5 : f32
    %18 = vector.broadcast %17 : f32 to vector<8x128xf32>
    %19 = arith.addf %16, %18 : vector<8x128xf32>
    %20 = tpu.reciprocal %19 : vector<8x128xf32> -> vector<8x128xf32>
    %21 = arith.mulf %8, %20 : vector<8x128xf32>
    %22 = tpu.concatenate %9, %15, %21 in 1 : vector<8x128xf32>, vector<8x128xf32>, vector<8x128xf32> -> vector<8x384xf32>
    %cst_8 = arith.constant dense<0.000000e+00> : vector<8x128xf32>
    %23 = tpu.matmul %22, %3, %cst_8 {dimension_numbers = #tpu.dot_dimension_numbers<[1], [0], [0], [1], [0, 0, 1, 1], [], []>} : vector<8x384xf32>, vector<384x128xf32>, vector<8x128xf32> -> vector<8x128xf32>
    %24 = arith.subf %0, %23 : vector<8x128xf32>
    %c0_9 = arith.constant 0 : index
    %c0_10 = arith.constant 0 : index
    %25 = vector.load %arg6[%c0_9, %c0_10] : memref<8x128xf32, #tpu.memory_space<vmem>>, vector<8x128xf32>
    tpu.vector_store %arg6[%c0_9, %c0_10], %24 {strides = array<i32>} : memref<8x128xf32, #tpu.memory_space<vmem>>, vector<8x128xf32>,
    return
  }
  func.func @transform_0(%arg0: i32, %arg1: memref<2xf32, #tpu.memory_space<smem>>) -> (i32, i32) {
    %c0_i32 = arith.constant 0 : i32
    %c0_i32_0 = arith.constant 0 : i32
    return %arg0, %c0_i32 : i32, i32
  }
  func.func @transform_1(%arg0: i32, %arg1: memref<2xf32, #tpu.memory_space<smem>>) -> (i32, i32) {
    %c0_i32 = arith.constant 0 : i32
    %c0_i32_0 = arith.constant 0 : i32
    return %arg0, %c0_i32 : i32, i32
  }
  func.func @transform_2(%arg0: i32, %arg1: memref<2xf32, #tpu.memory_space<smem>>) -> (i32, i32) {
    %c0_i32 = arith.constant 0 : i32
    %c0_i32_0 = arith.constant 0 : i32
    %c0_i32_1 = arith.constant 0 : i32
    return %c0_i32, %c0_i32_0 : i32, i32
  }
  func.func @transform_3(%arg0: i32, %arg1: memref<2xf32, #tpu.memory_space<smem>>) -> (i32, i32) {
    %c0_i32 = arith.constant 0 : i32
    %c0_i32_0 = arith.constant 0 : i32
    %c0_i32_1 = arith.constant 0 : i32
    return %c0_i32, %c0_i32_0 : i32, i32
  }
  func.func @transform_4(%arg0: i32, %arg1: memref<2xf32, #tpu.memory_space<smem>>) -> (i32, i32) {
    %c0_i32 = arith.constant 0 : i32
    %c0_i32_0 = arith.constant 0 : i32
    return %arg0, %c0_i32 : i32, i32
  }
}

</mosaic_0001>

<llo_original>
// kernel: tpu_custom_call.1
$region0: #{tpu_custom_call.1}
  #allocation0 [shape = 'u32[]', space=smem, size = 0x4, offset = 0x4, fixed_abs, tag = 'smem constant byte address 0x4 - core index']
  #allocation1 [shape = 'u32[144,128]{1,0:T(1,128)}', space=vmem, size = 0x12000, scoped, tag = 'internal scratch']
  #allocation2 [shape = 's32[1]{0}', space=sflag, size = 0x4, scoped, tag = 'scoped memory for tpu_custom_call.1']
  #allocation3 [shape = 'u8[512]{0}', space=smem, size = 0x200, scoped, tag = 'prefetched SMEM operand 0']
  %s0 = inlined_call_operand.hbm [shape: f32[2], index: 0, kind: input, shape index: {}]
  %s1 = inlined_call_operand.hbm [shape: f32[8,128], index: 1, kind: input, shape index: {}]
  %s2 = inlined_call_operand.hbm [shape: f32[8,128], index: 2, kind: input, shape index: {}]
  %s3 = inlined_call_operand.hbm [shape: f32[128,256], index: 3, kind: input, shape index: {}]
  %s4 = inlined_call_operand.hbm [shape: f32[384,128], index: 4, kind: input, shape index: {}]
  %s5 = inlined_call_operand.hbm [shape: f32[8,128], index: 5, kind: output, shape index: {}]
  %s6 = sld [smem:[#allocation0]]
  $region42: #{tpu_custom_call.1} parent=0
    _
  %s8 = ssub.s32 1, %s6
  %s9 = scalar_select 0, %s8, %s6
  %11 = dma.hbm_to_smem %s0, 16, [#allocation3], [#allocation2]
  %12 = dma.done [#allocation2], 16
  %13 = sfence
  $region1: #{tpu_custom_call.1} parent=0
    #allocation4 [shape = 'u8[4096]{0}', space=vmem, size = 0x1000, scoped, tag = 'input window, operand 1, single buffered']
    #allocation5 [shape = 's32[1]{0}', space=sflag, size = 0x4, scoped, tag = 'scoped memory for tpu_custom_call.1']
    #allocation6 [shape = 's32[1]{0}', space=sflag, size = 0x4, scoped, tag = 'scoped memory for tpu_custom_call.1']
    #allocation7 [shape = 'u8[4096]{0}', space=vmem, size = 0x1000, scoped, tag = 'input window, operand 2, single buffered']
    #allocation8 [shape = 's32[1]{0}', space=sflag, size = 0x4, scoped, tag = 'scoped memory for tpu_custom_call.1']
    #allocation9 [shape = 'u8[131072]{0}', space=vmem, size = 0x20000, scoped, tag = 'input window, operand 3, single buffered']
    #allocation10 [shape = 'u8[196608]{0}', space=vmem, size = 0x30000, scoped, tag = 'input window, operand 4, single buffered']
    #allocation11 [shape = 's32[1]{0}', space=sflag, size = 0x4, scoped, tag = 'scoped memory for tpu_custom_call.1']
    #allocation12 [shape = 'u8[4096]{0}', space=vmem, size = 0x1000, scoped, tag = 'output window, operand 0, single buffered']
    %14 = vsyncpa [#allocation5], 0
    %15 = vsyncpa [#allocation8], 0
    %16 = vsyncpa [#allocation11], 0
    %17 = vsyncpa [#allocation6], 0
    // Predicated region
    $region2: #{tpu_custom_call.1} parent=1 // pred_check
      _
    $region3: #{tpu_custom_call.1} parent=1 // pred_check_branch
      %19 = sbr.rel (0) target = $region5
    $region4: #{tpu_custom_call.1} parent=1 // pred_region
      %s21 = ssub.s32 128, 128
      %22 = vsyncadd [#allocation5], %s21
      %s24 = sshll.u32 [#allocation4], 4
      %s25 = int_to_ptr.vmem [resolvable:$true] %s24
      %27 = dma.hbm_to_vmem [thread:$0]  %s1, 128, %s25, [#allocation5]
    $region5: #{tpu_custom_call.1} parent=1 // pred_fallthru
      _
    // Predicated region
    $region6: #{tpu_custom_call.1} parent=1 // pred_check
      _
    $region7: #{tpu_custom_call.1} parent=1 // pred_check_branch
      %29 = sbr.rel (0) target = $region9
    $region8: #{tpu_custom_call.1} parent=1 // pred_region
      %s31 = ssub.s32 128, 128
      %32 = vsyncadd [#allocation8], %s31
      %s34 = sshll.u32 [#allocation7], 4
      %s35 = int_to_ptr.vmem [resolvable:$true] %s34
      %37 = dma.hbm_to_vmem [thread:$0]  %s2, 128, %s35, [#allocation8]
    $region9: #{tpu_custom_call.1} parent=1 // pred_fallthru
      _
    // Predicated region
    $region10: #{tpu_custom_call.1} parent=1 // pred_check
      _
    $region11: #{tpu_custom_call.1} parent=1 // pred_check_branch
      %39 = sbr.rel (0) target = $region13
    $region12: #{tpu_custom_call.1} parent=1 // pred_region
      %s41 = ssub.s32 4096, 4096
      %42 = vsyncadd [#allocation8], %s41
      %s43 = sshll.u32 [#allocation9], 4
      %s44 = int_to_ptr.vmem [resolvable:$true] %s43
      %49 = dma.hbm_to_vmem [thread:$0]  %s3, 4096, %s44, [#allocation8], 256, 256, 16
    $region13: #{tpu_custom_call.1} parent=1 // pred_fallthru
      _
    // Predicated region
    $region14: #{tpu_custom_call.1} parent=1 // pred_check
      _
    $region15: #{tpu_custom_call.1} parent=1 // pred_check_branch
      %51 = sbr.rel (0) target = $region17
    $region16: #{tpu_custom_call.1} parent=1 // pred_region
      %s53 = ssub.s32 6144, 6144
      %54 = vsyncadd [#allocation11], %s53
      %s55 = sshll.u32 [#allocation10], 4
      %s56 = int_to_ptr.vmem [resolvable:$true] %s55
      %61 = dma.hbm_to_vmem [thread:$0]  %s4, 6144, %s56, [#allocation11], 128, 128, 8
    $region17: #{tpu_custom_call.1} parent=1 // pred_fallthru
      _
    // Predicated region
    $region18: #{tpu_custom_call.1} parent=1 // pred_check
      _
    $region19: #{tpu_custom_call.1} parent=1 // pred_check_branch
      %63 = sbr.rel (0) target = $region21
    $region20: #{tpu_custom_call.1} parent=1 // pred_region
      %64 = dma.done [#allocation5], 128
    $region21: #{tpu_custom_call.1} parent=1 // pred_fallthru
      _
    // Predicated region
    $region22: #{tpu_custom_call.1} parent=1 // pred_check
      _
    $region23: #{tpu_custom_call.1} parent=1 // pred_check_branch
      %66 = sbr.rel (0) target = $region25
    $region24: #{tpu_custom_call.1} parent=1 // pred_region
      %67 = dma.done [#allocation8], 128
    $region25: #{tpu_custom_call.1} parent=1 // pred_fallthru
      _
    // Predicated region
    $region26: #{tpu_custom_call.1} parent=1 // pred_check
      _
    $region27: #{tpu_custom_call.1} parent=1 // pred_check_branch
      %69 = sbr.rel (0) target = $region29
    $region28: #{tpu_custom_call.1} parent=1 // pred_region
      %70 = dma.done [#allocation8], 4096
    $region29: #{tpu_custom_call.1} parent=1 // pred_fallthru
      _
    // Predicated region
    $region30: #{tpu_custom_call.1} parent=1 // pred_check
      _
    $region31: #{tpu_custom_call.1} parent=1 // pred_check_branch
      %72 = sbr.rel (0) target = $region33
    $region32: #{tpu_custom_call.1} parent=1 // pred_region
      %73 = dma.done [#allocation11], 6144
    $region33: #{tpu_custom_call.1} parent=1 // pred_fallthru
      _
    %v74 = vld [vmem:[#allocation4] sm:$0xff]
    %v75 = vld [vmem:[#allocation7] sm:$0xff]
    %v76 = vld [vmem:[#allocation9] sm:$0xff]
    %v77 = vld [vmem:[#allocation9 + $0x8] sm:$0xff]
    %v78 = vld [vmem:[#allocation9 + $0x10] sm:$0xff]
    %v79 = vld [vmem:[#allocation9 + $0x18] sm:$0xff]
    %v80 = vld [vmem:[#allocation9 + $0x20] sm:$0xff]
    %v81 = vld [vmem:[#allocation9 + $0x28] sm:$0xff]
    %v82 = vld [vmem:[#allocation9 + $0x30] sm:$0xff]
    %v83 = vld [vmem:[#allocation9 + $0x38] sm:$0xff]
    %v84 = vld [vmem:[#allocation9 + $0x40] sm:$0xff]
    %v85 = vld [vmem:[#allocation9 + $0x48] sm:$0xff]
    %v86 = vld [vmem:[#allocation9 + $0x50] sm:$0xff]
    %v87 = vld [vmem:[#allocation9 + $0x58] sm:$0xff]
    %v88 = vld [vmem:[#allocation9 + $0x60] sm:$0xff]
    %v89 = vld [vmem:[#allocation9 + $0x68] sm:$0xff]
    %v90 = vld [vmem:[#allocation9 + $0x70] sm:$0xff]
    %v91 = vld [vmem:[#allocation9 + $0x78] sm:$0xff]
    %v92 = vld [vmem:[#allocation9 + $0x80] sm:$0xff]
    %v93 = vld [vmem:[#allocation9 + $0x88] sm:$0xff]
    %v94 = vld [vmem:[#allocation9 + $0x90] sm:$0xff]
    %v95 = vld [vmem:[#allocation9 + $0x98] sm:$0xff]
    %v96 = vld [vmem:[#allocation9 + $0xa0] sm:$0xff]
    %v97 = vld [vmem:[#allocation9 + $0xa8] sm:$0xff]
    %v98 = vld [vmem:[#allocation9 + $0xb0] sm:$0xff]
    %v99 = vld [vmem:[#allocation9 + $0xb8] sm:$0xff]
    %v100 = vld [vmem:[#allocation9 + $0xc0] sm:$0xff]
    %v101 = vld [vmem:[#allocation9 + $0xc8] sm:$0xff]
    %v102 = vld [vmem:[#allocation9 + $0xd0] sm:$0xff]
    %v103 = vld [vmem:[#allocation9 + $0xd8] sm:$0xff]
    %v104 = vld [vmem:[#allocation9 + $0xe0] sm:$0xff]
    %v105 = vld [vmem:[#allocation9 + $0xe8] sm:$0xff]
    %v106 = vld [vmem:[#allocation9 + $0xf0] sm:$0xff]
    %v107 = vld [vmem:[#allocation9 + $0xf8] sm:$0xff]
    %v108 = vld [vmem:[#allocation10] sm:$0xff]
    %v109 = vld [vmem:[#allocation10 + $0x8] sm:$0xff]
    %v110 = vld [vmem:[#allocation10 + $0x10] sm:$0xff]
    %v111 = vld [vmem:[#allocation10 + $0x18] sm:$0xff]
    %v112 = vld [vmem:[#allocation10 + $0x20] sm:$0xff]
    %v113 = vld [vmem:[#allocation10 + $0x28] sm:$0xff]
    %v114 = vld [vmem:[#allocation10 + $0x30] sm:$0xff]
    %v115 = vld [vmem:[#allocation10 + $0x38] sm:$0xff]
    %v116 = vld [vmem:[#allocation10 + $0x40] sm:$0xff]
    %v117 = vld [vmem:[#allocation10 + $0x48] sm:$0xff]
    %v118 = vld [vmem:[#allocation10 + $0x50] sm:$0xff]
    %v119 = vld [vmem:[#allocation10 + $0x58] sm:$0xff]
    %v120 = vld [vmem:[#allocation10 + $0x60] sm:$0xff]
    %v121 = vld [vmem:[#allocation10 + $0x68] sm:$0xff]
    %v122 = vld [vmem:[#allocation10 + $0x70] sm:$0xff]
    %v123 = vld [vmem:[#allocation10 + $0x78] sm:$0xff]
    %v124 = vld [vmem:[#allocation10 + $0x80] sm:$0xff]
    %v125 = vld [vmem:[#allocation10 + $0x88] sm:$0xff]
    %v126 = vld [vmem:[#allocation10 + $0x90] sm:$0xff]
    %v127 = vld [vmem:[#allocation10 + $0x98] sm:$0xff]
    %v128 = vld [vmem:[#allocation10 + $0xa0] sm:$0xff]
    %v129 = vld [vmem:[#allocation10 + $0xa8] sm:$0xff]
    %v130 = vld [vmem:[#allocation10 + $0xb0] sm:$0xff]
    %v131 = vld [vmem:[#allocation10 + $0xb8] sm:$0xff]
    %v132 = vld [vmem:[#allocation10 + $0xc0] sm:$0xff]
    %v133 = vld [vmem:[#allocation10 + $0xc8] sm:$0xff]
    %v134 = vld [vmem:[#allocation10 + $0xd0] sm:$0xff]
    %v135 = vld [vmem:[#allocation10 + $0xd8] sm:$0xff]
    %v136 = vld [vmem:[#allocation10 + $0xe0] sm:$0xff]
    %v137 = vld [vmem:[#allocation10 + $0xe8] sm:$0xff]
    %v138 = vld [vmem:[#allocation10 + $0xf0] sm:$0xff]
    %v139 = vld [vmem:[#allocation10 + $0xf8] sm:$0xff]
    %v140 = vld [vmem:[#allocation10 + $0x100] sm:$0xff]
    %v141 = vld [vmem:[#allocation10 + $0x108] sm:$0xff]
    %v142 = vld [vmem:[#allocation10 + $0x110] sm:$0xff]
    %v143 = vld [vmem:[#allocation10 + $0x118] sm:$0xff]
    %v144 = vld [vmem:[#allocation10 + $0x120] sm:$0xff]
    %v145 = vld [vmem:[#allocation10 + $0x128] sm:$0xff]
    %v146 = vld [vmem:[#allocation10 + $0x130] sm:$0xff]
    %v147 = vld [vmem:[#allocation10 + $0x138] sm:$0xff]
    %v148 = vld [vmem:[#allocation10 + $0x140] sm:$0xff]
    %v149 = vld [vmem:[#allocation10 + $0x148] sm:$0xff]
    %v150 = vld [vmem:[#allocation10 + $0x150] sm:$0xff]
    %v151 = vld [vmem:[#allocation10 + $0x158] sm:$0xff]
    %v152 = vld [vmem:[#allocation10 + $0x160] sm:$0xff]
    %v153 = vld [vmem:[#allocation10 + $0x168] sm:$0xff]
    %v154 = vld [vmem:[#allocation10 + $0x170] sm:$0xff]
    %v155 = vld [vmem:[#allocation10 + $0x178] sm:$0xff]
    %s156 = sld [smem:[#allocation3]]
    %s157 = sld [smem:[#allocation3 + $0x1]]
    %158 = vmatprep.subr.mxu0 %v77
    %159 = vmatpush1.msra.mxu0 %v76
    %160 = vmatprep.subr.mxu0 %v79
    %161 = vmatpush1.msra.mxu0 %v78
    %162 = vmatprep.subr.mxu0 %v81
    %163 = vmatpush1.msra.mxu0 %v80
    %164 = vmatprep.subr.mxu0 %v83
    %165 = vmatpush1.msra.mxu0 %v82
    %166 = vmatprep.subr.mxu0 %v85
    %167 = vmatpush1.msra.mxu0 %v84
    %168 = vmatprep.subr.mxu0 %v87
    %169 = vmatpush1.msra.mxu0 %v86
    %170 = vmatprep.subr.mxu0 %v89
    %171 = vmatpush1.msra.mxu0 %v88
    %172 = vmatprep.subr.mxu0 %v91
    %173 = vmatpush1.msra.mxu0 %v90
    %174 = vmatprep.subr.mxu0 %v93
    %175 = vmatpush1.msra.mxu0 %v92
    %176 = vmatprep.subr.mxu0 %v95
    %177 = vmatpush1.msra.mxu0 %v94
    %178 = vmatprep.subr.mxu0 %v97
    %179 = vmatpush1.msra.mxu0 %v96
    %180 = vmatprep.subr.mxu0 %v99
    %181 = vmatpush1.msra.mxu0 %v98
    %182 = vmatprep.subr.mxu0 %v101
    %183 = vmatpush1.msra.mxu0 %v100
    %184 = vmatprep.subr.mxu0 %v103
    %185 = vmatpush1.msra.mxu0 %v102
    %186 = vmatprep.subr.mxu0 %v105
    %187 = vmatpush1.msra.mxu0 %v104
    %188 = vmatprep.subr.mxu0 %v107
    %189 = vmatpush1.msra.mxu0 %v106
    %190 = vmatprep.subr.mxu0 0.0
    %191 = vmatpush1.msra.mxu0 0.0
    %192 = vmatprep.subr.mxu0 0.0
    %193 = vmatpush1.msra.mxu0 0.0
    %194 = vmatprep.subr.mxu0 0.0
    %195 = vmatpush1.msra.mxu0 0.0
    %196 = vmatprep.subr.mxu0 0.0
    %197 = vmatpush1.msra.mxu0 0.0
    %198 = vmatprep.subr.mxu0 0.0
    %199 = vmatpush1.msra.mxu0 0.0
    %200 = vmatprep.subr.mxu0 0.0
    %201 = vmatpush1.msra.mxu0 0.0
    %202 = vmatprep.subr.mxu0 0.0
    %203 = vmatpush1.msra.mxu0 0.0
    %204 = vmatprep.subr.mxu0 0.0
    %205 = vmatpush1.msra.mxu0 0.0
    %206 = vmatprep.subr.mxu0 0.0
    %207 = vmatpush1.msra.mxu0 0.0
    %208 = vmatprep.subr.mxu0 0.0
    %209 = vmatpush1.msra.mxu0 0.0
    %210 = vmatprep.subr.mxu0 0.0
    %211 = vmatpush1.msra.mxu0 0.0
    %212 = vmatprep.subr.mxu0 0.0
    %213 = vmatpush1.msra.mxu0 0.0
    %214 = vmatprep.subr.mxu0 0.0
    %215 = vmatpush1.msra.mxu0 0.0
    %216 = vmatprep.subr.mxu0 0.0
    %217 = vmatpush1.msra.mxu0 0.0
    %218 = vmatprep.subr.mxu0 0.0
    %219 = vmatpush1.msra.mxu0 0.0
    %220 = vmatprep.subr.mxu0 0.0
    %221 = vmatpush1.msra.mxu0 0.0
    %222 = vmatprep.mubr.f32.mxu0 0.0
    %223 = vmatmul.mubr.f32.gmra.mrb[0].mxu0 %v74
    %v224 = vpop.f32.mrb[0].mxu0
    %v225 = vadd.f32 0.0, %v224
    %v226 = vpop.f32.mrb[0].mxu0
    %v227 = vadd.f32 0.0, %v226
    %228 = vdwg.mxu0
    %v229 = vsub.f32 %v225, %v75
    %v230 = vmul.f32 %v227, %v227
    %s231 = smul.f32 %s156, %s156
    %v232 = vstv %s231
    %v233 = vadd.f32 %v230, %v232
    %v234 = vrsqrt.pop %v233
    %v235 = vmul.f32 %v227, %v234
    %s236 = smul.f32 %s157, %s157
    %v237 = vstv %s236
    %v238 = vadd.f32 %v230, %v237
    %v239 = vrcp.pop %v238
    %v240 = vmul.f32 %v227, %v239
    %241 = vmatprep.subr.mxu0 0.0
    %242 = vmatpush1.msra.mxu0 %v108
    %243 = vmatprep.subr.mxu0 0.0
    %244 = vmatpush1.msra.mxu0 %v109
    %245 = vmatprep.subr.mxu0 0.0
    %246 = vmatpush1.msra.mxu0 %v110
    %247 = vmatprep.subr.mxu0 0.0
    %248 = vmatpush1.msra.mxu0 %v111
    %249 = vmatprep.subr.mxu0 0.0
    %250 = vmatpush1.msra.mxu0 %v112
    %251 = vmatprep.subr.mxu0 0.0
    %252 = vmatpush1.msra.mxu0 %v113
    %253 = vmatprep.subr.mxu0 0.0
    %254 = vmatpush1.msra.mxu0 %v114
    %255 = vmatprep.subr.mxu0 0.0
    %256 = vmatpush1.msra.mxu0 %v115
    %257 = vmatprep.subr.mxu0 0.0
    %258 = vmatpush1.msra.mxu0 %v116
    %259 = vmatprep.subr.mxu0 0.0
    %260 = vmatpush1.msra.mxu0 %v117
    %261 = vmatprep.subr.mxu0 0.0
    %262 = vmatpush1.msra.mxu0 %v118
    %263 = vmatprep.subr.mxu0 0.0
    %264 = vmatpush1.msra.mxu0 %v119
    %265 = vmatprep.subr.mxu0 0.0
    %266 = vmatpush1.msra.mxu0 %v120
    %267 = vmatprep.subr.mxu0 0.0
    %268 = vmatpush1.msra.mxu0 %v121
    %269 = vmatprep.subr.mxu0 0.0
    %270 = vmatpush1.msra.mxu0 %v122
    %271 = vmatprep.subr.mxu0 0.0
    %272 = vmatpush1.msra.mxu0 %v123
    %273 = vmatprep.subr.mxu0 0.0
    %274 = vmatpush1.msra.mxu0 %v124
    %275 = vmatprep.subr.mxu0 0.0
    %276 = vmatpush1.msra.mxu0 %v125
    %277 = vmatprep.subr.mxu0 0.0
    %278 = vmatpush1.msra.mxu0 %v126
    %279 = vmatprep.subr.mxu0 0.0
    %280 = vmatpush1.msra.mxu0 %v127
    %281 = vmatprep.subr.mxu0 0.0
    %282 = vmatpush1.msra.mxu0 %v128
    %283 = vmatprep.subr.mxu0 0.0
    %284 = vmatpush1.msra.mxu0 %v129
    %285 = vmatprep.subr.mxu0 0.0
    %286 = vmatpush1.msra.mxu0 %v130
    %287 = vmatprep.subr.mxu0 0.0
    %288 = vmatpush1.msra.mxu0 %v131
    %289 = vmatprep.subr.mxu0 0.0
    %290 = vmatpush1.msra.mxu0 %v132
    %291 = vmatprep.subr.mxu0 0.0
    %292 = vmatpush1.msra.mxu0 %v133
    %293 = vmatprep.subr.mxu0 0.0
    %294 = vmatpush1.msra.mxu0 %v134
    %295 = vmatprep.subr.mxu0 0.0
    %296 = vmatpush1.msra.mxu0 %v135
    %297 = vmatprep.subr.mxu0 0.0
    %298 = vmatpush1.msra.mxu0 %v136
    %299 = vmatprep.subr.mxu0 0.0
    %300 = vmatpush1.msra.mxu0 %v137
    %301 = vmatprep.subr.mxu0 0.0
    %302 = vmatpush1.msra.mxu0 %v138
    %303 = vmatprep.subr.mxu0 0.0
    %304 = vmatpush1.msra.mxu0 %v139
    %305 = vmatprep.mubr.f32.mxu0 %v235
    %306 = vmatmul.mubr.f32.gmra.mrb[0].mxu0 %v229
    %v307 = vpop.f32.mrb[0].mxu0
    %v308 = vadd.f32 0.0, %v307
    %v309 = vpop.f32.mrb[0].mxu0
    %310 = vdwg.mxu0
    %311 = vmatprep.subr.mxu0 0.0
    %312 = vmatpush1.msra.mxu0 %v140
    %313 = vmatprep.subr.mxu0 0.0
    %314 = vmatpush1.msra.mxu0 %v141
    %315 = vmatprep.subr.mxu0 0.0
    %316 = vmatpush1.msra.mxu0 %v142
    %317 = vmatprep.subr.mxu0 0.0
    %318 = vmatpush1.msra.mxu0 %v143
    %319 = vmatprep.subr.mxu0 0.0
    %320 = vmatpush1.msra.mxu0 %v144
    %321 = vmatprep.subr.mxu0 0.0
    %322 = vmatpush1.msra.mxu0 %v145
    %323 = vmatprep.subr.mxu0 0.0
    %324 = vmatpush1.msra.mxu0 %v146
    %325 = vmatprep.subr.mxu0 0.0
    %326 = vmatpush1.msra.mxu0 %v147
    %327 = vmatprep.subr.mxu0 0.0
    %328 = vmatpush1.msra.mxu0 %v148
    %329 = vmatprep.subr.mxu0 0.0
    %330 = vmatpush1.msra.mxu0 %v149
    %331 = vmatprep.subr.mxu0 0.0
    %332 = vmatpush1.msra.mxu0 %v150
    %333 = vmatprep.subr.mxu0 0.0
    %334 = vmatpush1.msra.mxu0 %v151
    %335 = vmatprep.subr.mxu0 0.0
    %336 = vmatpush1.msra.mxu0 %v152
    %337 = vmatprep.subr.mxu0 0.0
    %338 = vmatpush1.msra.mxu0 %v153
    %339 = vmatprep.subr.mxu0 0.0
    %340 = vmatpush1.msra.mxu0 %v154
    %341 = vmatprep.subr.mxu0 0.0
    %342 = vmatpush1.msra.mxu0 %v155
    %343 = vmatprep.subr.mxu0 0.0
    %344 = vmatpush1.msra.mxu0 0.0
    %345 = vmatprep.subr.mxu0 0.0
    %346 = vmatpush1.msra.mxu0 0.0
    %347 = vmatprep.subr.mxu0 0.0
    %348 = vmatpush1.msra.mxu0 0.0
    %349 = vmatprep.subr.mxu0 0.0
    %350 = vmatpush1.msra.mxu0 0.0
    %351 = vmatprep.subr.mxu0 0.0
    %352 = vmatpush1.msra.mxu0 0.0
    %353 = vmatprep.subr.mxu0 0.0
    %354 = vmatpush1.msra.mxu0 0.0
    %355 = vmatprep.subr.mxu0 0.0
    %356 = vmatpush1.msra.mxu0 0.0
    %357 = vmatprep.subr.mxu0 0.0
    %358 = vmatpush1.msra.mxu0 0.0
    %359 = vmatprep.subr.mxu0 0.0
    %360 = vmatpush1.msra.mxu0 0.0
    %361 = vmatprep.subr.mxu0 0.0
    %362 = vmatpush1.msra.mxu0 0.0
    %363 = vmatprep.subr.mxu0 0.0
    %364 = vmatpush1.msra.mxu0 0.0
    %365 = vmatprep.subr.mxu0 0.0
    %366 = vmatpush1.msra.mxu0 0.0
    %367 = vmatprep.subr.mxu0 0.0
    %368 = vmatpush1.msra.mxu0 0.0
    %369 = vmatprep.subr.mxu0 0.0
    %370 = vmatpush1.msra.mxu0 0.0
    %371 = vmatprep.subr.mxu0 0.0
    %372 = vmatpush1.msra.mxu0 0.0
    %373 = vmatprep.subr.mxu0 0.0
    %374 = vmatpush1.msra.mxu0 0.0
    %375 = vmatprep.mubr.f32.mxu0 0.0
    %376 = vmatmul.mubr.f32.gmra.mrb[0].mxu0 %v240
    %v377 = vpop.f32.mrb[0].mxu0
    %v378 = vadd.f32 %v308, %v377
    %v379 = vpop.f32.mrb[0].mxu0
    %380 = vdwg.mxu0
    %v381 = vsub.f32 %v74, %v378
    %382 = vst [vmem:[#allocation12] sm:$0xff] %v381
    // Predicated region
    $region34: #{tpu_custom_call.1} parent=1 // pred_check
      _
    $region35: #{tpu_custom_call.1} parent=1 // pred_check_branch
      %384 = sbr.rel (0) target = $region37
    $region36: #{tpu_custom_call.1} parent=1 // pred_region
      %s386 = ssub.s32 128, 128
      %387 = vsyncadd [#allocation6], %s386
      %s389 = sshll.u32 [#allocation12], 4
      %s390 = int_to_ptr.vmem [resolvable:$true] %s389
      %392 = dma.vmem_to_hbm [thread:$0]  %s390, 128, %s5, [#allocation6]
    $region37: #{tpu_custom_call.1} parent=1 // pred_fallthru
      _
    // Predicated region
    $region38: #{tpu_custom_call.1} parent=1 // pred_check
      _
    $region39: #{tpu_custom_call.1} parent=1 // pred_check_branch
      %394 = sbr.rel (0) target = $region41
    $region40: #{tpu_custom_call.1} parent=1 // pred_region
      %395 = dma.done [#allocation6], 128
    $region41: #{tpu_custom_call.1} parent=1 // pred_fallthru
      _
    %396 = vsyncpa [#allocation5], 1
    %397 = vsyncpa [#allocation8], 1
    %398 = vsyncpa [#allocation11], 1
    %399 = vsyncpa [#allocation6], 1

</llo_original>
